<compile_context>
chip_gen: v6e
topology: v6e:2x2x1
jax: 0.10.0
libtpu: 0.0.40
codegen_flags: <defaults>
</compile_context>

<pallas_src>
import functools

import jax
import jax.numpy as jnp
from jax.experimental import pallas as pl
from jax.experimental.pallas import tpu as pltpu


def _round_up(x, m):
    return (x + m - 1) // m * m


def _device_kind():
    try:
        return jax.devices()[0].device_kind.lower()
    except Exception:
        return ""


def _default_block_batch():
    kind = _device_kind()
    if "v5 lite" in kind or "v5e" in kind or "v5lite" in kind:
        return 128   # v5e MXU is 128 tall; M=128 already fills it.
    if "v6" in kind:
        return 512   # 128 MiB VMEM; bigger tiles amortize per-step overhead.
    return 256


def _vmem_limit_bytes():
    try:
        cap = int(pltpu.get_tpu_info().vmem_capacity_bytes)
    except Exception:
        cap = 64 * 2**20 if "v7" in _device_kind() else 128 * 2**20
    # ~25% headroom for compiler scratch + double-buffered activation tiles.
    return min(cap * 3 // 4, 100 * 2**20)


def biaffine_kernel(x1_ref, x2_ref, wb_ref, s_ref, wla_ref, wlb_ref, b_ref, o_ref):
    """One batch tile: bilinear + linear + bias, reductions on the MXU (f32 acc)."""
    x1 = x1_ref[...].astype(wb_ref.dtype)              # (TB, F)
    x2 = x2_ref[...].astype(wb_ref.dtype)              # (TB, F)
    feat = x1.shape[1]
    n_out = wb_ref.shape[1] // feat                     # static python int

    # Bilinear, step 1 (MXU): (TB, F) @ (F, O*F) -> (TB, O*F), f32 accumulate.
    tmp = jnp.dot(x1, wb_ref[...], preferred_element_type=jnp.float32)

    # Replicate x2 across the O lane blocks (in-VMEM lane concat, no HBM traffic).
    x2_rep = jnp.concatenate([x2] * n_out, axis=-1)     # (TB, O*F)

    # Bilinear, step 2 (MXU): per-output F reduction via the 0/1 selector S.
    prod = (tmp * x2_rep.astype(jnp.float32)).astype(s_ref.dtype)
    bil = jnp.dot(prod, s_ref[...], preferred_element_type=jnp.float32)   # (TB, O)

    # Linear part of concat(x1, x2) without materializing the concat (MXU).
    lin = jnp.dot(x1, wla_ref[...], preferred_element_type=jnp.float32)
    lin = lin + jnp.dot(x2, wlb_ref[...], preferred_element_type=jnp.float32)

    o_ref[...] = (bil + lin + b_ref[...]).astype(o_ref.dtype)


def prepare_biaffine_params(w_bil, w_lin, b_lin, compute_dtype=jnp.bfloat16):
    """One-time, per-parameter layout prep (NOT in the per-forward-call path).

      wb2d : (F, O*F)  wb2d[i, o*F + j] = W_bil[o, i, j]   (bf16 MXU operand)
      s    : (O*F, O)  0/1 selector, S[o*F + j, o] = 1      (exact in bf16)
      wla  : (F, O)    W_lin[:, :F].T   (x1 half of the concat-linear)
      wlb  : (F, O)    W_lin[:, F:].T   (x2 half)
      b2d  : (1, O)    bias, kept f32 (added to the f32 accumulator)
    """
    out_f, feat, _ = w_bil.shape
    wb2d = jnp.transpose(w_bil, (1, 0, 2)).reshape(feat, out_f * feat)
    wb2d = wb2d.astype(compute_dtype)
    s = jnp.kron(jnp.eye(out_f, dtype=jnp.float32),
                 jnp.ones((feat, 1), jnp.float32)).astype(compute_dtype)
    wla = w_lin[:, :feat].T.astype(compute_dtype)
    wlb = w_lin[:, feat:].T.astype(compute_dtype)
    b2d = b_lin.reshape(1, out_f).astype(jnp.float32)
    return wb2d, s, wla, wlb, b2d


@functools.partial(jax.jit, static_argnames=("block_batch", "single_buffer_weights"))
def _biaffine_impl(x1, x2, wb2d, s, wla, wlb, b2d, *, block_batch,
                   single_buffer_weights):
    n, feat = x1.shape
    out_f = wla.shape[1]

    # Batch tile: multiple of 8 sublanes, big enough to fill the MXU M dim and
    # amortize the ~0.35us grid-step overhead, clamped for small problems.
    blk = min(block_batch, _round_up(n, 8))
    grid = (pl.cdiv(n, blk),)   # ragged final block handled by Pallas.

    def act_spec():
        return pl.BlockSpec((blk, feat), lambda i: (i, 0))

    def weight_spec(shape):
        # Grid-invariant blocks: a single VMEM buffer suffices; the default
        # double-buffering would double the weight-side VMEM footprint.
        if single_buffer_weights:
            return pl.BlockSpec(shape, lambda i: (0, 0),
                                pipeline_mode=pl.Buffered(1))
        return pl.BlockSpec(shape, lambda i: (0, 0))

    return pl.pallas_call(
        biaffine_kernel,
        out_shape=jax.ShapeDtypeStruct((n, out_f), x1.dtype),
        grid_spec=pltpu.PrefetchScalarGridSpec(
            num_scalar_prefetch=0,
            grid=grid,
            in_specs=[
                act_spec(),                              # x1
                act_spec(),                              # x2
                weight_spec((feat, out_f * feat)),       # Wb
                weight_spec((out_f * feat, out_f)),      # S
                weight_spec((feat, out_f)),              # Wl_a
                weight_spec((feat, out_f)),              # Wl_b
                weight_spec((1, out_f)),                 # bias
            ],
            out_specs=pl.BlockSpec((blk, out_f), lambda i: (i, 0)),
        ),
        compiler_params=pltpu.CompilerParams(
            dimension_semantics=("parallel",),
            vmem_limit_bytes=_vmem_limit_bytes(),
        ),
    )(x1, x2, wb2d, s, wla, wlb, b2d)


def biaffine_attention(x1, x2, params, *, block_batch=None):
    """x1, x2: (N, ..., F); params: output of prepare_biaffine_params."""
    wb2d, s, wla, wlb, b2d = params
    out_f = wla.shape[1]
    lead = x1.shape[:-1]
    x1f = x1 if x1.ndim == 2 else x1.reshape(-1, x1.shape[-1])
    x2f = x2 if x2.ndim == 2 else x2.reshape(-1, x2.shape[-1])
    if block_batch is None:
        block_batch = _default_block_batch()
    try:
        out = _biaffine_impl(x1f, x2f, wb2d, s, wla, wlb, b2d,
                             block_batch=block_batch,
                             single_buffer_weights=True)
    except Exception:
        # TODO(synk): drop this fallback once pl.Buffered(1) is accepted by all
        # deployed jax/Mosaic versions.
        out = _biaffine_impl(x1f, x2f, wb2d, s, wla, wlb, b2d,
                             block_batch=block_batch,
                             single_buffer_weights=False)
    return out if len(lead) == 1 else out.reshape(*lead, out_f)


def biaffine_reference(x1, x2, w_bil, w_lin, b_lin):
    bil = jnp.einsum("bi,oij,bj->bo", x1, w_bil, x2)
    xc = jnp.concatenate([x1, x2], axis=-1)
    return bil + xc @ w_lin.T + b_lin


if __name__ == "__main__":
    batch, in_features, out_features = 32, 32, 4

    key = jax.random.PRNGKey(0)
    k1, k2, k3, k4, k5 = jax.random.split(key, 5)

    # Deterministic parameter init (uniform, roughly matching torch fan-in).
    bound_bil = 1.0 / (in_features ** 0.5)
    bound_lin = 1.0 / ((2 * in_features) ** 0.5)
    w_bil = jax.random.uniform(k1, (out_features, in_features, in_features),
                               jnp.float32, -bound_bil, bound_bil)
    w_lin = jax.random.uniform(k2, (out_features, 2 * in_features),
                               jnp.float32, -bound_lin, bound_lin)
    b_lin = jax.random.uniform(k3, (out_features,), jnp.float32,
                               -bound_lin, bound_lin)

    x1 = jax.random.normal(k4, (batch, in_features), jnp.float32)
    x2 = jax.random.normal(k5, (batch, in_features), jnp.float32)

    # One-time layout prep (bf16 MXU operands), hoisted out of the per-call path.
    params = prepare_biaffine_params(w_bil, w_lin, b_lin)

    out = biaffine_attention(x1, x2, params)
    out = jax.block_until_ready(out)

    ref = biaffine_reference(x1, x2, w_bil, w_lin, b_lin)
    assert out.shape == (batch, out_features)
    # bf16 MXU operands with f32 accumulation: ~1e-2-level relative error.
    max_err = float(jnp.max(jnp.abs(out - ref)))
    assert jnp.allclose(out, ref, atol=2.5e-1, rtol=5e-2), max_err

    print("KERNEL_OK")
</pallas_src>

<mosaic_0001>
module attributes {stable_mosaic.version = 11 : i64} {
  func.func @biaffine_kernel(%arg0: i32, %arg1: memref<32x32xf32, #tpu.memory_space<vmem>>, %arg2: memref<32x32xf32, #tpu.memory_space<vmem>>, %arg3: memref<32x128xbf16, #tpu.memory_space<vmem>>, %arg4: memref<128x4xbf16, #tpu.memory_space<vmem>>, %arg5: memref<32x4xbf16, #tpu.memory_space<vmem>>, %arg6: memref<32x4xbf16, #tpu.memory_space<vmem>>, %arg7: memref<1x4xf32, #tpu.memory_space<vmem>>, %arg8: memref<32x4xf32, #tpu.memory_space<vmem>>) attributes {dimension_semantics = [#tpu.dimension_semantics<parallel>], iteration_bounds = array<i64: 1>, scalar_prefetch = 0 : i64, scratch_operands = 0 : i64, tpu.core_type = #tpu.core_type<tc>, window_params = [{transform_indices = @transform_0, window_bounds = array<i64: 32, 32>}, {transform_indices = @transform_1, window_bounds = array<i64: 32, 32>}, {pipeline_mode = #tpu.pipeline_mode<synchronous>, transform_indices = @transform_2, window_bounds = array<i64: 32, 128>}, {pipeline_mode = #tpu.pipeline_mode<synchronous>, transform_indices = @transform_3, window_bounds = array<i64: 128, 4>}, {pipeline_mode = #tpu.pipeline_mode<synchronous>, transform_indices = @transform_4, window_bounds = array<i64: 32, 4>}, {pipeline_mode = #tpu.pipeline_mode<synchronous>, transform_indices = @transform_5, window_bounds = array<i64: 32, 4>}, {pipeline_mode = #tpu.pipeline_mode<synchronous>, transform_indices = @transform_6, window_bounds = array<i64: 1, 4>}, {transform_indices = @transform_7, window_bounds = array<i64: 32, 4>}]} {
    %c0 = arith.constant 0 : index
    %c0_0 = arith.constant 0 : index
    %0 = vector.load %arg1[%c0, %c0_0] : memref<32x32xf32, #tpu.memory_space<vmem>>, vector<32x32xf32>
    %1 = arith.truncf %0 : vector<32x32xf32> to vector<32x32xbf16>
    %c0_1 = arith.constant 0 : index
    %c0_2 = arith.constant 0 : index
    %2 = vector.load %arg2[%c0_1, %c0_2] : memref<32x32xf32, #tpu.memory_space<vmem>>, vector<32x32xf32>
    %3 = arith.truncf %2 : vector<32x32xf32> to vector<32x32xbf16>
    %c0_3 = arith.constant 0 : index
    %c0_4 = arith.constant 0 : index
    %4 = vector.load %arg3[%c0_3, %c0_4] : memref<32x128xbf16, #tpu.memory_space<vmem>>, vector<32x128xbf16>
    %cst = arith.constant dense<0.000000e+00> : vector<32x128xf32>
    %5 = tpu.matmul %1, %4, %cst {dimension_numbers = #tpu.dot_dimension_numbers<[1], [0], [0], [1], [0, 0, 1, 1], [], []>} : vector<32x32xbf16>, vector<32x128xbf16>, vector<32x128xf32> -> vector<32x128xf32>
    %6 = tpu.concatenate %3, %3, %3, %3 in 1 : vector<32x32xbf16>, vector<32x32xbf16>, vector<32x32xbf16>, vector<32x32xbf16> -> vector<32x128xbf16>
    %7 = arith.extf %6 : vector<32x128xbf16> to vector<32x128xf32>
    %8 = arith.mulf %5, %7 : vector<32x128xf32>
    %9 = arith.truncf %8 : vector<32x128xf32> to vector<32x128xbf16>
    %c0_5 = arith.constant 0 : index
    %c0_6 = arith.constant 0 : index
    %10 = vector.load %arg4[%c0_5, %c0_6] : memref<128x4xbf16, #tpu.memory_space<vmem>>, vector<128x4xbf16>
    %cst_7 = arith.constant dense<0.000000e+00> : vector<32x4xf32>
    %11 = tpu.matmul %9, %10, %cst_7 {dimension_numbers = #tpu.dot_dimension_numbers<[1], [0], [0], [1], [0, 0, 1, 1], [], []>} : vector<32x128xbf16>, vector<128x4xbf16>, vector<32x4xf32> -> vector<32x4xf32>
    %c0_8 = arith.constant 0 : index
    %c0_9 = arith.constant 0 : index
    %12 = vector.load %arg5[%c0_8, %c0_9] : memref<32x4xbf16, #tpu.memory_space<vmem>>, vector<32x4xbf16>
    %cst_10 = arith.constant dense<0.000000e+00> : vector<32x4xf32>
    %13 = tpu.matmul %1, %12, %cst_10 {dimension_numbers = #tpu.dot_dimension_numbers<[1], [0], [0], [1], [0, 0, 1, 1], [], []>} : vector<32x32xbf16>, vector<32x4xbf16>, vector<32x4xf32> -> vector<32x4xf32>
    %c0_11 = arith.constant 0 : index
    %c0_12 = arith.constant 0 : index
    %14 = vector.load %arg6[%c0_11, %c0_12] : memref<32x4xbf16, #tpu.memory_space<vmem>>, vector<32x4xbf16>
    %cst_13 = arith.constant dense<0.000000e+00> : vector<32x4xf32>
    %15 = tpu.matmul %3, %14, %cst_13 {dimension_numbers = #tpu.dot_dimension_numbers<[1], [0], [0], [1], [0, 0, 1, 1], [], []>} : vector<32x32xbf16>, vector<32x4xbf16>, vector<32x4xf32> -> vector<32x4xf32>
    %16 = arith.addf %13, %15 : vector<32x4xf32>
    %17 = arith.addf %11, %16 : vector<32x4xf32>
    %c0_14 = arith.constant 0 : index
    %c0_15 = arith.constant 0 : index
    %18 = vector.load %arg7[%c0_14, %c0_15] : memref<1x4xf32, #tpu.memory_space<vmem>>, vector<1x4xf32>
    %19 = vector.broadcast %18 : vector<1x4xf32> to vector<32x4xf32>
    %20 = arith.addf %17, %19 : vector<32x4xf32>
    %c0_16 = arith.constant 0 : index
    %c0_17 = arith.constant 0 : index
    %21 = vector.load %arg8[%c0_16, %c0_17] : memref<32x4xf32, #tpu.memory_space<vmem>>, vector<32x4xf32>
    tpu.vector_store %arg8[%c0_16, %c0_17], %20 {strides = array<i32>} : memref<32x4xf32, #tpu.memory_space<vmem>>, vector<32x4xf32>,
    return
  }
  func.func @transform_0(%arg0: i32) -> (i32, i32) {
    %c0_i32 = arith.constant 0 : i32
    %c0_i32_0 = arith.constant 0 : i32
    return %arg0, %c0_i32 : i32, i32
  }
  func.func @transform_1(%arg0: i32) -> (i32, i32) {
    %c0_i32 = arith.constant 0 : i32
    %c0_i32_0 = arith.constant 0 : i32
    return %arg0, %c0_i32 : i32, i32
  }
  func.func @transform_2(%arg0: i32) -> (i32, i32) {
    %c0_i32 = arith.constant 0 : i32
    %c0_i32_0 = arith.constant 0 : i32
    %c0_i32_1 = arith.constant 0 : i32
    return %c0_i32, %c0_i32_0 : i32, i32
  }
  func.func @transform_3(%arg0: i32) -> (i32, i32) {
    %c0_i32 = arith.constant 0 : i32
    %c0_i32_0 = arith.constant 0 : i32
    %c0_i32_1 = arith.constant 0 : i32
    return %c0_i32, %c0_i32_0 : i32, i32
  }
  func.func @transform_4(%arg0: i32) -> (i32, i32) {
    %c0_i32 = arith.constant 0 : i32
    %c0_i32_0 = arith.constant 0 : i32
    %c0_i32_1 = arith.constant 0 : i32
    return %c0_i32, %c0_i32_0 : i32, i32
  }
  func.func @transform_5(%arg0: i32) -> (i32, i32) {
    %c0_i32 = arith.constant 0 : i32
    %c0_i32_0 = arith.constant 0 : i32
    %c0_i32_1 = arith.constant 0 : i32
    return %c0_i32, %c0_i32_0 : i32, i32
  }
  func.func @transform_6(%arg0: i32) -> (i32, i32) {
    %c0_i32 = arith.constant 0 : i32
    %c0_i32_0 = arith.constant 0 : i32
    %c0_i32_1 = arith.constant 0 : i32
    return %c0_i32, %c0_i32_0 : i32, i32
  }
  func.func @transform_7(%arg0: i32) -> (i32, i32) {
    %c0_i32 = arith.constant 0 : i32
    %c0_i32_0 = arith.constant 0 : i32
    return %arg0, %c0_i32 : i32, i32
  }
}

module attributes {stable_mosaic.version = 11 : i64} {
  func.func @biaffine_kernel(%arg0: i32, %arg1: memref<32x32xf32, #tpu.memory_space<vmem>>, %arg2: memref<32x32xf32, #tpu.memory_space<vmem>>, %arg3: memref<32x128xbf16, #tpu.memory_space<vmem>>, %arg4: memref<128x4xbf16, #tpu.memory_space<vmem>>, %arg5: memref<32x4xbf16, #tpu.memory_space<vmem>>, %arg6: memref<32x4xbf16, #tpu.memory_space<vmem>>, %arg7: memref<1x4xf32, #tpu.memory_space<vmem>>, %arg8: memref<32x4xf32, #tpu.memory_space<vmem>>) attributes {dimension_semantics = [#tpu.dimension_semantics<parallel>], iteration_bounds = array<i64: 1>, scalar_prefetch = 0 : i64, scratch_operands = 0 : i64, tpu.core_type = #tpu.core_type<tc>, window_params = [{transform_indices = @transform_0, window_bounds = array<i64: 32, 32>}, {transform_indices = @transform_1, window_bounds = array<i64: 32, 32>}, {pipeline_mode = #tpu.pipeline_mode<synchronous>, transform_indices = @transform_2, window_bounds = array<i64: 32, 128>}, {pipeline_mode = #tpu.pipeline_mode<synchronous>, transform_indices = @transform_3, window_bounds = array<i64: 128, 4>}, {pipeline_mode = #tpu.pipeline_mode<synchronous>, transform_indices = @transform_4, window_bounds = array<i64: 32, 4>}, {pipeline_mode = #tpu.pipeline_mode<synchronous>, transform_indices = @transform_5, window_bounds = array<i64: 32, 4>}, {pipeline_mode = #tpu.pipeline_mode<synchronous>, transform_indices = @transform_6, window_bounds = array<i64: 1, 4>}, {transform_indices = @transform_7, window_bounds = array<i64: 32, 4>}]} {
    %c0 = arith.constant 0 : index
    %c0_0 = arith.constant 0 : index
    %0 = vector.load %arg1[%c0, %c0_0] : memref<32x32xf32, #tpu.memory_space<vmem>>, vector<32x32xf32>
    %1 = arith.truncf %0 : vector<32x32xf32> to vector<32x32xbf16>
    %c0_1 = arith.constant 0 : index
    %c0_2 = arith.constant 0 : index
    %2 = vector.load %arg2[%c0_1, %c0_2] : memref<32x32xf32, #tpu.memory_space<vmem>>, vector<32x32xf32>
    %3 = arith.truncf %2 : vector<32x32xf32> to vector<32x32xbf16>
    %c0_3 = arith.constant 0 : index
    %c0_4 = arith.constant 0 : index
    %4 = vector.load %arg3[%c0_3, %c0_4] : memref<32x128xbf16, #tpu.memory_space<vmem>>, vector<32x128xbf16>
    %cst = arith.constant dense<0.000000e+00> : vector<32x128xf32>
    %5 = tpu.matmul %1, %4, %cst {dimension_numbers = #tpu.dot_dimension_numbers<[1], [0], [0], [1], [0, 0, 1, 1], [], []>} : vector<32x32xbf16>, vector<32x128xbf16>, vector<32x128xf32> -> vector<32x128xf32>
    %6 = tpu.concatenate %3, %3, %3, %3 in 1 : vector<32x32xbf16>, vector<32x32xbf16>, vector<32x32xbf16>, vector<32x32xbf16> -> vector<32x128xbf16>
    %7 = arith.extf %6 : vector<32x128xbf16> to vector<32x128xf32>
    %8 = arith.mulf %5, %7 : vector<32x128xf32>
    %9 = arith.truncf %8 : vector<32x128xf32> to vector<32x128xbf16>
    %c0_5 = arith.constant 0 : index
    %c0_6 = arith.constant 0 : index
    %10 = vector.load %arg4[%c0_5, %c0_6] : memref<128x4xbf16, #tpu.memory_space<vmem>>, vector<128x4xbf16>
    %cst_7 = arith.constant dense<0.000000e+00> : vector<32x4xf32>
    %11 = tpu.matmul %9, %10, %cst_7 {dimension_numbers = #tpu.dot_dimension_numbers<[1], [0], [0], [1], [0, 0, 1, 1], [], []>} : vector<32x128xbf16>, vector<128x4xbf16>, vector<32x4xf32> -> vector<32x4xf32>
    %c0_8 = arith.constant 0 : index
    %c0_9 = arith.constant 0 : index
    %12 = vector.load %arg5[%c0_8, %c0_9] : memref<32x4xbf16, #tpu.memory_space<vmem>>, vector<32x4xbf16>
    %cst_10 = arith.constant dense<0.000000e+00> : vector<32x4xf32>
    %13 = tpu.matmul %1, %12, %cst_10 {dimension_numbers = #tpu.dot_dimension_numbers<[1], [0], [0], [1], [0, 0, 1, 1], [], []>} : vector<32x32xbf16>, vector<32x4xbf16>, vector<32x4xf32> -> vector<32x4xf32>
    %c0_11 = arith.constant 0 : index
    %c0_12 = arith.constant 0 : index
    %14 = vector.load %arg6[%c0_11, %c0_12] : memref<32x4xbf16, #tpu.memory_space<vmem>>, vector<32x4xbf16>
    %cst_13 = arith.constant dense<0.000000e+00> : vector<32x4xf32>
    %15 = tpu.matmul %3, %14, %cst_13 {dimension_numbers = #tpu.dot_dimension_numbers<[1], [0], [0], [1], [0, 0, 1, 1], [], []>} : vector<32x32xbf16>, vector<32x4xbf16>, vector<32x4xf32> -> vector<32x4xf32>
    %16 = arith.addf %13, %15 : vector<32x4xf32>
    %17 = arith.addf %11, %16 : vector<32x4xf32>
    %c0_14 = arith.constant 0 : index
    %c0_15 = arith.constant 0 : index
    %18 = vector.load %arg7[%c0_14, %c0_15] : memref<1x4xf32, #tpu.memory_space<vmem>>, vector<1x4xf32>
    %19 = vector.broadcast %18 : vector<1x4xf32> to vector<32x4xf32>
    %20 = arith.addf %17, %19 : vector<32x4xf32>
    %c0_16 = arith.constant 0 : index
    %c0_17 = arith.constant 0 : index
    %21 = vector.load %arg8[%c0_16, %c0_17] : memref<32x4xf32, #tpu.memory_space<vmem>>, vector<32x4xf32>
    tpu.vector_store %arg8[%c0_16, %c0_17], %20 {strides = array<i32>} : memref<32x4xf32, #tpu.memory_space<vmem>>, vector<32x4xf32>,
    return
  }
  func.func @transform_0(%arg0: i32) -> (i32, i32) {
    %c0_i32 = arith.constant 0 : i32
    %c0_i32_0 = arith.constant 0 : i32
    return %arg0, %c0_i32 : i32, i32
  }
  func.func @transform_1(%arg0: i32) -> (i32, i32) {
    %c0_i32 = arith.constant 0 : i32
    %c0_i32_0 = arith.constant 0 : i32
    return %arg0, %c0_i32 : i32, i32
  }
  func.func @transform_2(%arg0: i32) -> (i32, i32) {
    %c0_i32 = arith.constant 0 : i32
    %c0_i32_0 = arith.constant 0 : i32
    %c0_i32_1 = arith.constant 0 : i32
    return %c0_i32, %c0_i32_0 : i32, i32
  }
  func.func @transform_3(%arg0: i32) -> (i32, i32) {
    %c0_i32 = arith.constant 0 : i32
    %c0_i32_0 = arith.constant 0 : i32
    %c0_i32_1 = arith.constant 0 : i32
    return %c0_i32, %c0_i32_0 : i32, i32
  }
  func.func @transform_4(%arg0: i32) -> (i32, i32) {
    %c0_i32 = arith.constant 0 : i32
    %c0_i32_0 = arith.constant 0 : i32
    %c0_i32_1 = arith.constant 0 : i32
    return %c0_i32, %c0_i32_0 : i32, i32
  }
  func.func @transform_5(%arg0: i32) -> (i32, i32) {
    %c0_i32 = arith.constant 0 : i32
    %c0_i32_0 = arith.constant 0 : i32
    %c0_i32_1 = arith.constant 0 : i32
    return %c0_i32, %c0_i32_0 : i32, i32
  }
  func.func @transform_6(%arg0: i32) -> (i32, i32) {
    %c0_i32 = arith.constant 0 : i32
    %c0_i32_0 = arith.constant 0 : i32
    %c0_i32_1 = arith.constant 0 : i32
    return %c0_i32, %c0_i32_0 : i32, i32
  }
  func.func @transform_7(%arg0: i32) -> (i32, i32) {
    %c0_i32 = arith.constant 0 : i32
    %c0_i32_0 = arith.constant 0 : i32
    return %arg0, %c0_i32 : i32, i32
  }
}

</mosaic_0001>

<llo_original>
// kernel: _biaffine_impl.1
$region0: #{_biaffine_impl.1}
  #allocation0 [shape = 'u32[]', space=smem, size = 0x4, offset = 0x4, fixed_abs, tag = 'smem constant byte address 0x4 - core index']
  #allocation1 [shape = 'u32[144,128]{1,0:T(1,128)}', space=vmem, size = 0x12000, scoped, tag = 'internal scratch']
  %s0 = inlined_call_operand.vmem [shape: f32[32,32], index: 0, kind: input, shape index: {}]
  %s1 = inlined_call_operand.vmem [shape: f32[32,32], index: 1, kind: input, shape index: {}]
  %s2 = inlined_call_operand.vmem [shape: bf16[32,128], index: 2, kind: input, shape index: {}]
  %s3 = inlined_call_operand.vmem [shape: bf16[128,4], index: 3, kind: input, shape index: {}]
  %s4 = inlined_call_operand.vmem [shape: bf16[32,4], index: 4, kind: input, shape index: {}]
  %s5 = inlined_call_operand.vmem [shape: bf16[32,4], index: 5, kind: input, shape index: {}]
  %s6 = inlined_call_operand.vmem [shape: f32[1,4], index: 6, kind: input, shape index: {}]
  %s7 = inlined_call_operand.vmem [shape: f32[32,4], index: 7, kind: output, shape index: {}]
  %s8 = sld [smem:[#allocation0]]
  $region38: #{_biaffine_impl.1} parent=0
    _
  %s10 = ssub.s32 1, %s8
  %s11 = scalar_select 0, %s10, %s8
  // Predicated region
  $region2: #{_biaffine_impl.1} parent=0 // pred_check
    _
  $region3: #{_biaffine_impl.1} parent=0 // pred_check_branch
    %13 = sbr.rel (0) target = $region5
  $region4: #{_biaffine_impl.1} parent=0 // pred_region
    _
  $region5: #{_biaffine_impl.1} parent=0 // pred_fallthru
    _
  // Predicated region
  $region6: #{_biaffine_impl.1} parent=0 // pred_check
    _
  $region7: #{_biaffine_impl.1} parent=0 // pred_check_branch
    %15 = sbr.rel (0) target = $region9
  $region8: #{_biaffine_impl.1} parent=0 // pred_region
    _
  $region9: #{_biaffine_impl.1} parent=0 // pred_fallthru
    _
  // Predicated region
  $region10: #{_biaffine_impl.1} parent=0 // pred_check
    _
  $region11: #{_biaffine_impl.1} parent=0 // pred_check_branch
    %17 = sbr.rel (0) target = $region13
  $region12: #{_biaffine_impl.1} parent=0 // pred_region
    _
  $region13: #{_biaffine_impl.1} parent=0 // pred_fallthru
    _
  // Predicated region
  $region14: #{_biaffine_impl.1} parent=0 // pred_check
    _
  $region15: #{_biaffine_impl.1} parent=0 // pred_check_branch
    %19 = sbr.rel (0) target = $region17
  $region16: #{_biaffine_impl.1} parent=0 // pred_region
    _
  $region17: #{_biaffine_impl.1} parent=0 // pred_fallthru
    _
  // Predicated region
  $region18: #{_biaffine_impl.1} parent=0 // pred_check
    _
  $region19: #{_biaffine_impl.1} parent=0 // pred_check_branch
    %21 = sbr.rel (0) target = $region21
  $region20: #{_biaffine_impl.1} parent=0 // pred_region
    _
  $region21: #{_biaffine_impl.1} parent=0 // pred_fallthru
    _
  // Predicated region
  $region22: #{_biaffine_impl.1} parent=0 // pred_check
    _
  $region23: #{_biaffine_impl.1} parent=0 // pred_check_branch
    %23 = sbr.rel (0) target = $region25
  $region24: #{_biaffine_impl.1} parent=0 // pred_region
    _
  $region25: #{_biaffine_impl.1} parent=0 // pred_fallthru
    _
  // Predicated region
  $region26: #{_biaffine_impl.1} parent=0 // pred_check
    _
  $region27: #{_biaffine_impl.1} parent=0 // pred_check_branch
    %25 = sbr.rel (0) target = $region29
  $region28: #{_biaffine_impl.1} parent=0 // pred_region
    _
  $region29: #{_biaffine_impl.1} parent=0 // pred_fallthru
    _
  %v27 = vld [vmem:[%s0] sm:$0xff]
  %v28 = vld [vmem:[%s0 + $0x8] sm:$0xff]
  %v29 = vld [vmem:[%s0 + $0x10] sm:$0xff]
  %v30 = vld [vmem:[%s0 + $0x18] sm:$0xff]
  %v31 = vpack.c.bf16 %v28, %v27
  %v32 = vpack.c.bf16 %v30, %v29
  %v33 = vld [vmem:[%s1] sm:$0xff]
  %v34 = vld [vmem:[%s1 + $0x8] sm:$0xff]
  %v35 = vld [vmem:[%s1 + $0x10] sm:$0xff]
  %v36 = vld [vmem:[%s1 + $0x18] sm:$0xff]
  %v37 = vpack.c.bf16 %v34, %v33
  %v38 = vpack.c.bf16 %v36, %v35
  %v39 = vld [vmem:[%s2] sm:$0xf]
  %v40 = vld [vmem:[%s2 + $0x4] sm:$0xf]
  %v41 = vld [vmem:[%s2 + $0x8] sm:$0xf]
  %v42 = vld [vmem:[%s2 + $0xc] sm:$0xf]
  %v47 = vunpack.c.l.b16 %v39
  %v48 = vunpack.c.l.b16 %v40
  %v49 = vunpack.c.l.b16 %v41
  %v50 = vunpack.c.l.b16 %v42
  %v51 = vpack.c.b16 %v48, %v47
  %v52 = vpack.c.b16 %v50, %v49
  %vm55 = vcmask 261120
  %v57 = vsel %vm55, %v31, 0
  %v60 = vsel %vm55, %v32, 0
  %62 = vmatprep.subr.bf16.mxu0 0
  %63 = vmatpush1.bf16.msra.mxu0 0
  %64 = vmatprep.subr.bf16.mxu0 0
  %65 = vmatpush1.bf16.msra.mxu0 0
  %66 = vmatprep.subr.bf16.mxu0 0
  %67 = vmatpush1.bf16.msra.mxu0 0
  %68 = vmatprep.subr.bf16.mxu0 0
  %69 = vmatpush1.bf16.msra.mxu0 0
  %70 = vmatprep.subr.bf16.mxu0 0
  %71 = vmatpush1.bf16.msra.mxu0 0
  %72 = vmatprep.subr.bf16.mxu0 0
  %73 = vmatpush1.bf16.msra.mxu0 0
  %74 = vmatprep.subr.bf16.mxu0 0
  %75 = vmatpush1.bf16.msra.mxu0 %v52
  %76 = vmatprep.subr.bf16.mxu0 0
  %77 = vmatpush1.bf16.msra.mxu0 %v51
  %78 = vmatprep.subr.bf16.mxu0 0
  %79 = vmatpush2.bf16.msra.mxu0 0
  %80 = vmatprep.subr.bf16.mxu0 0
  %81 = vmatpush2.bf16.msra.mxu0 0
  %82 = vmatprep.subr.bf16.mxu0 0
  %83 = vmatpush2.bf16.msra.mxu0 0
  %84 = vmatprep.subr.bf16.mxu0 0
  %85 = vmatpush2.bf16.msra.mxu0 0
  %86 = vmatprep.subr.bf16.mxu0 0
  %87 = vmatpush2.bf16.msra.mxu0 0
  %88 = vmatprep.subr.bf16.mxu0 0
  %89 = vmatpush2.bf16.msra.mxu0 0
  %90 = vmatprep.subr.bf16.mxu0 0
  %91 = vmatpush2.bf16.msra.mxu0 0
  %92 = vmatprep.subr.bf16.mxu0 0
  %93 = vmatpush2.bf16.msra.mxu0 0
  %94 = vmatprep.mubr.bf16.mxu0 0
  %95 = vmatmul.mubr.bf16.gmra.mxu0 %v57
  %v96 = vpop.f32.mrf.mxu0
  %v97 = vadd.f32 0.0, %v96
  %v98 = vpop.f32.mrf.mxu0
  %v99 = vpop.f32.mrf.mxu0
  %v100 = vadd.f32 0.0, %v99
  %v101 = vpop.f32.mrf.mxu0
  %102 = vmatprep.mubr.bf16.mxu0 0
  %103 = vmatmul.mubr.bf16.gmra.mxu0 %v60
  %v104 = vpop.f32.mrf.mxu0
  %v105 = vadd.f32 0.0, %v104
  %v106 = vpop.f32.mrf.mxu0
  %v107 = vpop.f32.mrf.mxu0
  %v108 = vadd.f32 0.0, %v107
  %v109 = vpop.f32.mrf.mxu0
  %110 = vdwg.mxu0
  %113 = vrot.lane.b32.xlu0 %v37, 32
  %v114 = vpop.permute.xlu0 %113
  %115 = vrot.lane.b32.xlu0 %v38, 32
  %v116 = vpop.permute.xlu0 %115
  %117 = vrot.lane.b32.xlu0 %v37, 64
  %v118 = vpop.permute.xlu0 %117
  %119 = vrot.lane.b32.xlu0 %v38, 64
  %v120 = vpop.permute.xlu0 %119
  %121 = vrot.lane.b32.xlu0 %v37, 96
  %v122 = vpop.permute.xlu0 %121
  %123 = vrot.lane.b32.xlu0 %v38, 96
  %v124 = vpop.permute.xlu0 %123
  %v127 = vsel %vm55, %v37, %v114
  %v130 = vsel %vm55, %v38, %v116
  %vm131 = vcmask 523264
  %v133 = vsel %vm131, %v127, %v118
  %v135 = vsel %vm131, %v130, %v120
  %vm136 = vcmask 785408
  %v138 = vsel %vm136, %v133, %v122
  %v141 = vsel %vm136, %v135, %v124
  %v143 = vunpack.c.l.bf16 %v138
  %v144 = vunpack.c.h.bf16 %v138
  %v145 = vunpack.c.l.bf16 %v141
  %v146 = vunpack.c.h.bf16 %v141
  %v147 = vmul.f32 %v97, %v143
  %v148 = vmul.f32 %v100, %v144
  %v149 = vmul.f32 %v105, %v145
  %v150 = vmul.f32 %v108, %v146
  %v151 = vpack.c.bf16 %v148, %v147
  %v152 = vpack.c.bf16 %v150, %v149
  %v153 = vld [vmem:[%s3] sm:$0xf]
  %v154 = vld [vmem:[%s3 + $0x4] sm:$0xf]
  %v155 = vld [vmem:[%s3 + $0x8] sm:$0xf]
  %v156 = vld [vmem:[%s3 + $0xc] sm:$0xf]
  %v157 = vld [vmem:[%s3 + $0x10] sm:$0xf]
  %v158 = vld [vmem:[%s3 + $0x14] sm:$0xf]
  %v159 = vld [vmem:[%s3 + $0x18] sm:$0xf]
  %v160 = vld [vmem:[%s3 + $0x1c] sm:$0xf]
  %v161 = vld [vmem:[%s3 + $0x20] sm:$0xf]
  %v162 = vld [vmem:[%s3 + $0x24] sm:$0xf]
  %v163 = vld [vmem:[%s3 + $0x28] sm:$0xf]
  %v164 = vld [vmem:[%s3 + $0x2c] sm:$0xf]
  %v165 = vld [vmem:[%s3 + $0x30] sm:$0xf]
  %v166 = vld [vmem:[%s3 + $0x34] sm:$0xf]
  %v167 = vld [vmem:[%s3 + $0x38] sm:$0xf]
  %v168 = vld [vmem:[%s3 + $0x3c] sm:$0xf]
  %v169 = vld [vmem:[%s4] sm:$0xf]
  %v170 = vld [vmem:[%s4 + $0x4] sm:$0xf]
  %v171 = vld [vmem:[%s4 + $0x8] sm:$0xf]
  %v172 = vld [vmem:[%s4 + $0xc] sm:$0xf]
  %v173 = vld [vmem:[%s5] sm:$0xf]
  %v174 = vld [vmem:[%s5 + $0x4] sm:$0xf]
  %v175 = vld [vmem:[%s5 + $0x8] sm:$0xf]
  %v176 = vld [vmem:[%s5 + $0xc] sm:$0xf]
  %v181 = vunpack.c.l.b16 %v173
  %v182 = vunpack.c.l.b16 %v174
  %v183 = vunpack.c.l.b16 %v175
  %v184 = vunpack.c.l.b16 %v176
  %v185 = vpack.c.b16 %v182, %v181
  %v186 = vpack.c.b16 %v184, %v183
  %v189 = vsel %vm55, %v37, 0
  %v191 = vsel %vm55, %v38, 0
  %193 = vmatprep.subr.bf16.mxu0 0
  %194 = vmatpush1.bf16.msra.mxu0 0
  %195 = vmatprep.subr.bf16.mxu0 0
  %196 = vmatpush1.bf16.msra.mxu0 0
  %197 = vmatprep.subr.bf16.mxu0 0
  %198 = vmatpush1.bf16.msra.mxu0 0
  %199 = vmatprep.subr.bf16.mxu0 0
  %200 = vmatpush1.bf16.msra.mxu0 0
  %201 = vmatprep.subr.bf16.mxu0 0
  %202 = vmatpush1.bf16.msra.mxu0 0
  %203 = vmatprep.subr.bf16.mxu0 0
  %204 = vmatpush1.bf16.msra.mxu0 0
  %205 = vmatprep.subr.bf16.mxu0 0
  %206 = vmatpush1.bf16.msra.mxu0 %v186
  %207 = vmatprep.subr.bf16.mxu0 0
  %208 = vmatpush1.bf16.msra.mxu0 %v185
  %209 = vmatprep.subr.bf16.mxu0 0
  %210 = vmatpush2.bf16.msra.mxu0 0
  %211 = vmatprep.subr.bf16.mxu0 0
  %212 = vmatpush2.bf16.msra.mxu0 0
  %213 = vmatprep.subr.bf16.mxu0 0
  %214 = vmatpush2.bf16.msra.mxu0 0
  %215 = vmatprep.subr.bf16.mxu0 0
  %216 = vmatpush2.bf16.msra.mxu0 0
  %217 = vmatprep.subr.bf16.mxu0 0
  %218 = vmatpush2.bf16.msra.mxu0 0
  %219 = vmatprep.subr.bf16.mxu0 0
  %220 = vmatpush2.bf16.msra.mxu0 0
  %221 = vmatprep.subr.bf16.mxu0 0
  %222 = vmatpush2.bf16.msra.mxu0 0
  %223 = vmatprep.subr.bf16.mxu0 0
  %224 = vmatpush2.bf16.msra.mxu0 0
  %225 = vmatprep.mubr.bf16.mxu0 0
  %226 = vmatmul.mubr.bf16.gmra.mxu0 %v189
  %v227 = vpop.f32.mrf.mxu0
  %v228 = vadd.f32 0.0, %v227
  %v229 = vpop.f32.mrf.mxu0
  %v230 = vpop.f32.mrf.mxu0
  %v231 = vadd.f32 0.0, %v230
  %v232 = vpop.f32.mrf.mxu0
  %233 = vmatprep.mubr.bf16.mxu0 0
  %234 = vmatmul.mubr.bf16.gmra.mxu0 %v191
  %v235 = vpop.f32.mrf.mxu0
  %v236 = vadd.f32 0.0, %v235
  %v237 = vpop.f32.mrf.mxu0
  %v238 = vpop.f32.mrf.mxu0
  %v239 = vadd.f32 0.0, %v238
  %v240 = vpop.f32.mrf.mxu0
  %241 = vdwg.mxu0
  %v246 = vunpack.c.l.b16 %v169
  %v247 = vunpack.c.l.b16 %v170
  %v248 = vunpack.c.l.b16 %v171
  %v249 = vunpack.c.l.b16 %v172
  %v250 = vpack.c.b16 %v247, %v246
  %v251 = vpack.c.b16 %v249, %v248
  %254 = vmatprep.subr.bf16.mxu0 0
  %255 = vmatpush1.bf16.msra.mxu0 0
  %256 = vmatprep.subr.bf16.mxu0 0
  %257 = vmatpush1.bf16.msra.mxu0 0
  %258 = vmatprep.subr.bf16.mxu0 0
  %259 = vmatpush1.bf16.msra.mxu0 0
  %260 = vmatprep.subr.bf16.mxu0 0
  %261 = vmatpush1.bf16.msra.mxu0 0
  %262 = vmatprep.subr.bf16.mxu0 0
  %263 = vmatpush1.bf16.msra.mxu0 0
  %264 = vmatprep.subr.bf16.mxu0 0
  %265 = vmatpush1.bf16.msra.mxu0 0
  %266 = vmatprep.subr.bf16.mxu0 0
  %267 = vmatpush1.bf16.msra.mxu0 %v251
  %268 = vmatprep.subr.bf16.mxu0 0
  %269 = vmatpush1.bf16.msra.mxu0 %v250
  %270 = vmatprep.subr.bf16.mxu0 0
  %271 = vmatpush2.bf16.msra.mxu0 0
  %272 = vmatprep.subr.bf16.mxu0 0
  %273 = vmatpush2.bf16.msra.mxu0 0
  %274 = vmatprep.subr.bf16.mxu0 0
  %275 = vmatpush2.bf16.msra.mxu0 0
  %276 = vmatprep.subr.bf16.mxu0 0
  %277 = vmatpush2.bf16.msra.mxu0 0
  %278 = vmatprep.subr.bf16.mxu0 0
  %279 = vmatpush2.bf16.msra.mxu0 0
  %280 = vmatprep.subr.bf16.mxu0 0
  %281 = vmatpush2.bf16.msra.mxu0 0
  %282 = vmatprep.subr.bf16.mxu0 0
  %283 = vmatpush2.bf16.msra.mxu0 0
  %284 = vmatprep.subr.bf16.mxu0 0
  %285 = vmatpush2.bf16.msra.mxu0 0
  %286 = vmatprep.mubr.bf16.mxu0 0
  %287 = vmatmul.mubr.bf16.gmra.mxu0 %v57
  %v288 = vpop.f32.mrf.mxu0
  %v289 = vadd.f32 %v228, %v288
  %v290 = vpop.f32.mrf.mxu0
  %v291 = vpop.f32.mrf.mxu0
  %v292 = vadd.f32 %v231, %v291
  %v293 = vpop.f32.mrf.mxu0
  %294 = vmatprep.mubr.bf16.mxu0 0
  %295 = vmatmul.mubr.bf16.gmra.mxu0 %v60
  %v296 = vpop.f32.mrf.mxu0
  %v297 = vadd.f32 %v236, %v296
  %v298 = vpop.f32.mrf.mxu0
  %v299 = vpop.f32.mrf.mxu0
  %v300 = vadd.f32 %v239, %v299
  %v301 = vpop.f32.mrf.mxu0
  %302 = vdwg.mxu0
  %v319 = vunpack.c.l.b16 %v153
  %v320 = vunpack.c.l.b16 %v154
  %v321 = vunpack.c.l.b16 %v155
  %v322 = vunpack.c.l.b16 %v156
  %v323 = vunpack.c.l.b16 %v157
  %v324 = vunpack.c.l.b16 %v158
  %v325 = vunpack.c.l.b16 %v159
  %v326 = vunpack.c.l.b16 %v160
  %v327 = vunpack.c.l.b16 %v161
  %v328 = vunpack.c.l.b16 %v162
  %v329 = vunpack.c.l.b16 %v163
  %v330 = vunpack.c.l.b16 %v164
  %v331 = vunpack.c.l.b16 %v165
  %v332 = vunpack.c.l.b16 %v166
  %v333 = vunpack.c.l.b16 %v167
  %v334 = vunpack.c.l.b16 %v168
  %v335 = vpack.c.b16 %v320, %v319
  %v336 = vpack.c.b16 %v322, %v321
  %v337 = vpack.c.b16 %v324, %v323
  %v338 = vpack.c.b16 %v326, %v325
  %v339 = vpack.c.b16 %v328, %v327
  %v340 = vpack.c.b16 %v330, %v329
  %v341 = vpack.c.b16 %v332, %v331
  %v342 = vpack.c.b16 %v334, %v333
  %351 = vmatprep.subr.bf16.mxu0 0
  %352 = vmatpush1.bf16.msra.mxu0 %v342
  %353 = vmatprep.subr.bf16.mxu0 0
  %354 = vmatpush1.bf16.msra.mxu0 %v341
  %355 = vmatprep.subr.bf16.mxu0 0
  %356 = vmatpush1.bf16.msra.mxu0 %v340
  %357 = vmatprep.subr.bf16.mxu0 0
  %358 = vmatpush1.bf16.msra.mxu0 %v339
  %359 = vmatprep.subr.bf16.mxu0 0
  %360 = vmatpush1.bf16.msra.mxu0 %v338
  %361 = vmatprep.subr.bf16.mxu0 0
  %362 = vmatpush1.bf16.msra.mxu0 %v337
  %363 = vmatprep.subr.bf16.mxu0 0
  %364 = vmatpush1.bf16.msra.mxu0 %v336
  %365 = vmatprep.subr.bf16.mxu0 0
  %366 = vmatpush1.bf16.msra.mxu0 %v335
  %367 = vmatprep.subr.bf16.mxu0 0
  %368 = vmatpush2.bf16.msra.mxu0 0
  %369 = vmatprep.subr.bf16.mxu0 0
  %370 = vmatpush2.bf16.msra.mxu0 0
  %371 = vmatprep.subr.bf16.mxu0 0
  %372 = vmatpush2.bf16.msra.mxu0 0
  %373 = vmatprep.subr.bf16.mxu0 0
  %374 = vmatpush2.bf16.msra.mxu0 0
  %375 = vmatprep.subr.bf16.mxu0 0
  %376 = vmatpush2.bf16.msra.mxu0 0
  %377 = vmatprep.subr.bf16.mxu0 0
  %378 = vmatpush2.bf16.msra.mxu0 0
  %379 = vmatprep.subr.bf16.mxu0 0
  %380 = vmatpush2.bf16.msra.mxu0 0
  %381 = vmatprep.subr.bf16.mxu0 0
  %382 = vmatpush2.bf16.msra.mxu0 0
  %383 = vmatprep.mubr.bf16.mxu0 0
  %384 = vmatmul.mubr.bf16.gmra.mxu0 %v151
  %v385 = vpop.f32.mrf.mxu0
  %v386 = vadd.f32 %v289, %v385
  %v387 = vpop.f32.mrf.mxu0
  %v388 = vpop.f32.mrf.mxu0
  %v389 = vadd.f32 %v292, %v388
  %v390 = vpop.f32.mrf.mxu0
  %391 = vmatprep.mubr.bf16.mxu0 0
  %392 = vmatmul.mubr.bf16.gmra.mxu0 %v152
  %v393 = vpop.f32.mrf.mxu0
  %v394 = vadd.f32 %v297, %v393
  %v395 = vpop.f32.mrf.mxu0
  %v396 = vpop.f32.mrf.mxu0
  %v397 = vadd.f32 %v300, %v396
  %v398 = vpop.f32.mrf.mxu0
  %399 = vdwg.mxu0
  %v400 = vld [vmem:[%s6] sm:$0x1]
  %v402 = vlaneseq
  %v403 = vshrl.u32 %v402, 7
  %v404 = vsub.s32 0, %v403
  %v405 = vrot.slane %v400, %v404
  %v407 = vadd.f32 %v386, %v405
  %v408 = vadd.f32 %v389, %v405
  %v409 = vadd.f32 %v394, %v405
  %v410 = vadd.f32 %v397, %v405
  %vm411 = vcmask 31744
  %412 = vst.msk [vmem:[%s7] sm:$0xff] %vm411, %v407
  %413 = vst.msk [vmem:[%s7 + $0x8] sm:$0xff] %vm411, %v408
  %414 = vst.msk [vmem:[%s7 + $0x10] sm:$0xff] %vm411, %v409
  %415 = vst.msk [vmem:[%s7 + $0x18] sm:$0xff] %vm411, %v410
  // Predicated region
  $region30: #{_biaffine_impl.1} parent=0 // pred_check
    _
  $region31: #{_biaffine_impl.1} parent=0 // pred_check_branch
    %417 = sbr.rel (0) target = $region33
  $region32: #{_biaffine_impl.1} parent=0 // pred_region
    _
  $region33: #{_biaffine_impl.1} parent=0 // pred_fallthru
    _
  // Predicated region
  $region34: #{_biaffine_impl.1} parent=0 // pred_check
    _
  $region35: #{_biaffine_impl.1} parent=0 // pred_check_branch
    %419 = sbr.rel (0) target = $region37
  $region36: #{_biaffine_impl.1} parent=0 // pred_region
    _
  $region37: #{_biaffine_impl.1} parent=0 // pred_fallthru
    _

// kernel: _biaffine_impl.1
$region0: #{_biaffine_impl.1}
  #allocation0 [shape = 'u32[]', space=smem, size = 0x4, offset = 0x4, fixed_abs, tag = 'smem constant byte address 0x4 - core index']
  #allocation1 [shape = 'u32[144,128]{1,0:T(1,128)}', space=vmem, size = 0x12000, scoped, tag = 'internal scratch']
  %s0 = inlined_call_operand.vmem [shape: f32[32,32], index: 0, kind: input, shape index: {}]
  %s1 = inlined_call_operand.vmem [shape: f32[32,32], index: 1, kind: input, shape index: {}]
  %s2 = inlined_call_operand.vmem [shape: bf16[32,128], index: 2, kind: input, shape index: {}]
  %s3 = inlined_call_operand.vmem [shape: bf16[128,4], index: 3, kind: input, shape index: {}]
  %s4 = inlined_call_operand.vmem [shape: bf16[32,4], index: 4, kind: input, shape index: {}]
  %s5 = inlined_call_operand.vmem [shape: bf16[32,4], index: 5, kind: input, shape index: {}]
  %s6 = inlined_call_operand.vmem [shape: f32[1,4], index: 6, kind: input, shape index: {}]
  %s7 = inlined_call_operand.vmem [shape: f32[32,4], index: 7, kind: output, shape index: {}]
  %s8 = sld [smem:[#allocation0]]
  $region38: #{_biaffine_impl.1} parent=0
    _
  %s10 = ssub.s32 1, %s8
  %s11 = scalar_select 0, %s10, %s8
  // Predicated region
  $region2: #{_biaffine_impl.1} parent=0 // pred_check
    _
  $region3: #{_biaffine_impl.1} parent=0 // pred_check_branch
    %13 = sbr.rel (0) target = $region5
  $region4: #{_biaffine_impl.1} parent=0 // pred_region
    _
  $region5: #{_biaffine_impl.1} parent=0 // pred_fallthru
    _
  // Predicated region
  $region6: #{_biaffine_impl.1} parent=0 // pred_check
    _
  $region7: #{_biaffine_impl.1} parent=0 // pred_check_branch
    %15 = sbr.rel (0) target = $region9
  $region8: #{_biaffine_impl.1} parent=0 // pred_region
    _
  $region9: #{_biaffine_impl.1} parent=0 // pred_fallthru
    _
  // Predicated region
  $region10: #{_biaffine_impl.1} parent=0 // pred_check
    _
  $region11: #{_biaffine_impl.1} parent=0 // pred_check_branch
    %17 = sbr.rel (0) target = $region13
  $region12: #{_biaffine_impl.1} parent=0 // pred_region
    _
  $region13: #{_biaffine_impl.1} parent=0 // pred_fallthru
    _
  // Predicated region
  $region14: #{_biaffine_impl.1} parent=0 // pred_check
    _
  $region15: #{_biaffine_impl.1} parent=0 // pred_check_branch
    %19 = sbr.rel (0) target = $region17
  $region16: #{_biaffine_impl.1} parent=0 // pred_region
    _
  $region17: #{_biaffine_impl.1} parent=0 // pred_fallthru
    _
  // Predicated region
  $region18: #{_biaffine_impl.1} parent=0 // pred_check
    _
  $region19: #{_biaffine_impl.1} parent=0 // pred_check_branch
    %21 = sbr.rel (0) target = $region21
  $region20: #{_biaffine_impl.1} parent=0 // pred_region
    _
  $region21: #{_biaffine_impl.1} parent=0 // pred_fallthru
    _
  // Predicated region
  $region22: #{_biaffine_impl.1} parent=0 // pred_check
    _
  $region23: #{_biaffine_impl.1} parent=0 // pred_check_branch
    %23 = sbr.rel (0) target = $region25
  $region24: #{_biaffine_impl.1} parent=0 // pred_region
    _
  $region25: #{_biaffine_impl.1} parent=0 // pred_fallthru
    _
  // Predicated region
  $region26: #{_biaffine_impl.1} parent=0 // pred_check
    _
  $region27: #{_biaffine_impl.1} parent=0 // pred_check_branch
    %25 = sbr.rel (0) target = $region29
  $region28: #{_biaffine_impl.1} parent=0 // pred_region
    _
  $region29: #{_biaffine_impl.1} parent=0 // pred_fallthru
    _
  %v27 = vld [vmem:[%s0] sm:$0xff]
  %v28 = vld [vmem:[%s0 + $0x8] sm:$0xff]
  %v29 = vld [vmem:[%s0 + $0x10] sm:$0xff]
  %v30 = vld [vmem:[%s0 + $0x18] sm:$0xff]
  %v31 = vpack.c.bf16 %v28, %v27
  %v32 = vpack.c.bf16 %v30, %v29
  %v33 = vld [vmem:[%s1] sm:$0xff]
  %v34 = vld [vmem:[%s1 + $0x8] sm:$0xff]
  %v35 = vld [vmem:[%s1 + $0x10] sm:$0xff]
  %v36 = vld [vmem:[%s1 + $0x18] sm:$0xff]
  %v37 = vpack.c.bf16 %v34, %v33
  %v38 = vpack.c.bf16 %v36, %v35
  %v39 = vld [vmem:[%s2] sm:$0xf]
  %v40 = vld [vmem:[%s2 + $0x4] sm:$0xf]
  %v41 = vld [vmem:[%s2 + $0x8] sm:$0xf]
  %v42 = vld [vmem:[%s2 + $0xc] sm:$0xf]
  %v47 = vunpack.c.l.b16 %v39
  %v48 = vunpack.c.l.b16 %v40
  %v49 = vunpack.c.l.b16 %v41
  %v50 = vunpack.c.l.b16 %v42
  %v51 = vpack.c.b16 %v48, %v47
  %v52 = vpack.c.b16 %v50, %v49
  %vm55 = vcmask 261120
  %v57 = vsel %vm55, %v31, 0
  %v60 = vsel %vm55, %v32, 0
  %62 = vmatprep.subr.bf16.mxu0 0
  %63 = vmatpush1.bf16.msra.mxu0 0
  %64 = vmatprep.subr.bf16.mxu0 0
  %65 = vmatpush1.bf16.msra.mxu0 0
  %66 = vmatprep.subr.bf16.mxu0 0
  %67 = vmatpush1.bf16.msra.mxu0 0
  %68 = vmatprep.subr.bf16.mxu0 0
  %69 = vmatpush1.bf16.msra.mxu0 0
  %70 = vmatprep.subr.bf16.mxu0 0
  %71 = vmatpush1.bf16.msra.mxu0 0
  %72 = vmatprep.subr.bf16.mxu0 0
  %73 = vmatpush1.bf16.msra.mxu0 0
  %74 = vmatprep.subr.bf16.mxu0 0
  %75 = vmatpush1.bf16.msra.mxu0 %v52
  %76 = vmatprep.subr.bf16.mxu0 0
  %77 = vmatpush1.bf16.msra.mxu0 %v51
  %78 = vmatprep.subr.bf16.mxu0 0
  %79 = vmatpush2.bf16.msra.mxu0 0
  %80 = vmatprep.subr.bf16.mxu0 0
  %81 = vmatpush2.bf16.msra.mxu0 0
  %82 = vmatprep.subr.bf16.mxu0 0
  %83 = vmatpush2.bf16.msra.mxu0 0
  %84 = vmatprep.subr.bf16.mxu0 0
  %85 = vmatpush2.bf16.msra.mxu0 0
  %86 = vmatprep.subr.bf16.mxu0 0
  %87 = vmatpush2.bf16.msra.mxu0 0
  %88 = vmatprep.subr.bf16.mxu0 0
  %89 = vmatpush2.bf16.msra.mxu0 0
  %90 = vmatprep.subr.bf16.mxu0 0
  %91 = vmatpush2.bf16.msra.mxu0 0
  %92 = vmatprep.subr.bf16.mxu0 0
  %93 = vmatpush2.bf16.msra.mxu0 0
  %94 = vmatprep.mubr.bf16.mxu0 0
  %95 = vmatmul.mubr.bf16.gmra.mxu0 %v57
  %v96 = vpop.f32.mrf.mxu0
  %v97 = vadd.f32 0.0, %v96
  %v98 = vpop.f32.mrf.mxu0
  %v99 = vpop.f32.mrf.mxu0
  %v100 = vadd.f32 0.0, %v99
  %v101 = vpop.f32.mrf.mxu0
  %102 = vmatprep.mubr.bf16.mxu0 0
  %103 = vmatmul.mubr.bf16.gmra.mxu0 %v60
  %v104 = vpop.f32.mrf.mxu0
  %v105 = vadd.f32 0.0, %v104
  %v106 = vpop.f32.mrf.mxu0
  %v107 = vpop.f32.mrf.mxu0
  %v108 = vadd.f32 0.0, %v107
  %v109 = vpop.f32.mrf.mxu0
  %110 = vdwg.mxu0
  %113 = vrot.lane.b32.xlu0 %v37, 32
  %v114 = vpop.permute.xlu0 %113
  %115 = vrot.lane.b32.xlu0 %v38, 32
  %v116 = vpop.permute.xlu0 %115
  %117 = vrot.lane.b32.xlu0 %v37, 64
  %v118 = vpop.permute.xlu0 %117
  %119 = vrot.lane.b32.xlu0 %v38, 64
  %v120 = vpop.permute.xlu0 %119
  %121 = vrot.lane.b32.xlu0 %v37, 96
  %v122 = vpop.permute.xlu0 %121
  %123 = vrot.lane.b32.xlu0 %v38, 96
  %v124 = vpop.permute.xlu0 %123
  %v127 = vsel %vm55, %v37, %v114
  %v130 = vsel %vm55, %v38, %v116
  %vm131 = vcmask 523264
  %v133 = vsel %vm131, %v127, %v118
  %v135 = vsel %vm131, %v130, %v120
  %vm136 = vcmask 785408
  %v138 = vsel %vm136, %v133, %v122
  %v141 = vsel %vm136, %v135, %v124
  %v143 = vunpack.c.l.bf16 %v138
  %v144 = vunpack.c.h.bf16 %v138
  %v145 = vunpack.c.l.bf16 %v141
  %v146 = vunpack.c.h.bf16 %v141
  %v147 = vmul.f32 %v97, %v143
  %v148 = vmul.f32 %v100, %v144
  %v149 = vmul.f32 %v105, %v145
  %v150 = vmul.f32 %v108, %v146
  %v151 = vpack.c.bf16 %v148, %v147
  %v152 = vpack.c.bf16 %v150, %v149
  %v153 = vld [vmem:[%s3] sm:$0xf]
  %v154 = vld [vmem:[%s3 + $0x4] sm:$0xf]
  %v155 = vld [vmem:[%s3 + $0x8] sm:$0xf]
  %v156 = vld [vmem:[%s3 + $0xc] sm:$0xf]
  %v157 = vld [vmem:[%s3 + $0x10] sm:$0xf]
  %v158 = vld [vmem:[%s3 + $0x14] sm:$0xf]
  %v159 = vld [vmem:[%s3 + $0x18] sm:$0xf]
  %v160 = vld [vmem:[%s3 + $0x1c] sm:$0xf]
  %v161 = vld [vmem:[%s3 + $0x20] sm:$0xf]
  %v162 = vld [vmem:[%s3 + $0x24] sm:$0xf]
  %v163 = vld [vmem:[%s3 + $0x28] sm:$0xf]
  %v164 = vld [vmem:[%s3 + $0x2c] sm:$0xf]
  %v165 = vld [vmem:[%s3 + $0x30] sm:$0xf]
  %v166 = vld [vmem:[%s3 + $0x34] sm:$0xf]
  %v167 = vld [vmem:[%s3 + $0x38] sm:$0xf]
  %v168 = vld [vmem:[%s3 + $0x3c] sm:$0xf]
  %v169 = vld [vmem:[%s4] sm:$0xf]
  %v170 = vld [vmem:[%s4 + $0x4] sm:$0xf]
  %v171 = vld [vmem:[%s4 + $0x8] sm:$0xf]
  %v172 = vld [vmem:[%s4 + $0xc] sm:$0xf]
  %v173 = vld [vmem:[%s5] sm:$0xf]
  %v174 = vld [vmem:[%s5 + $0x4] sm:$0xf]
  %v175 = vld [vmem:[%s5 + $0x8] sm:$0xf]
  %v176 = vld [vmem:[%s5 + $0xc] sm:$0xf]
  %v181 = vunpack.c.l.b16 %v173
  %v182 = vunpack.c.l.b16 %v174
  %v183 = vunpack.c.l.b16 %v175
  %v184 = vunpack.c.l.b16 %v176
  %v185 = vpack.c.b16 %v182, %v181
  %v186 = vpack.c.b16 %v184, %v183
  %v189 = vsel %vm55, %v37, 0
  %v191 = vsel %vm55, %v38, 0
  %193 = vmatprep.subr.bf16.mxu0 0
  %194 = vmatpush1.bf16.msra.mxu0 0
  %195 = vmatprep.subr.bf16.mxu0 0
  %196 = vmatpush1.bf16.msra.mxu0 0
  %197 = vmatprep.subr.bf16.mxu0 0
  %198 = vmatpush1.bf16.msra.mxu0 0
  %199 = vmatprep.subr.bf16.mxu0 0
  %200 = vmatpush1.bf16.msra.mxu0 0
  %201 = vmatprep.subr.bf16.mxu0 0
  %202 = vmatpush1.bf16.msra.mxu0 0
  %203 = vmatprep.subr.bf16.mxu0 0
  %204 = vmatpush1.bf16.msra.mxu0 0
  %205 = vmatprep.subr.bf16.mxu0 0
  %206 = vmatpush1.bf16.msra.mxu0 %v186
  %207 = vmatprep.subr.bf16.mxu0 0
  %208 = vmatpush1.bf16.msra.mxu0 %v185
  %209 = vmatprep.subr.bf16.mxu0 0
  %210 = vmatpush2.bf16.msra.mxu0 0
  %211 = vmatprep.subr.bf16.mxu0 0
  %212 = vmatpush2.bf16.msra.mxu0 0
  %213 = vmatprep.subr.bf16.mxu0 0
  %214 = vmatpush2.bf16.msra.mxu0 0
  %215 = vmatprep.subr.bf16.mxu0 0
  %216 = vmatpush2.bf16.msra.mxu0 0
  %217 = vmatprep.subr.bf16.mxu0 0
  %218 = vmatpush2.bf16.msra.mxu0 0
  %219 = vmatprep.subr.bf16.mxu0 0
  %220 = vmatpush2.bf16.msra.mxu0 0
  %221 = vmatprep.subr.bf16.mxu0 0
  %222 = vmatpush2.bf16.msra.mxu0 0
  %223 = vmatprep.subr.bf16.mxu0 0
  %224 = vmatpush2.bf16.msra.mxu0 0
  %225 = vmatprep.mubr.bf16.mxu0 0
  %226 = vmatmul.mubr.bf16.gmra.mxu0 %v189
  %v227 = vpop.f32.mrf.mxu0
  %v228 = vadd.f32 0.0, %v227
  %v229 = vpop.f32.mrf.mxu0
  %v230 = vpop.f32.mrf.mxu0
  %v231 = vadd.f32 0.0, %v230
  %v232 = vpop.f32.mrf.mxu0
  %233 = vmatprep.mubr.bf16.mxu0 0
  %234 = vmatmul.mubr.bf16.gmra.mxu0 %v191
  %v235 = vpop.f32.mrf.mxu0
  %v236 = vadd.f32 0.0, %v235
  %v237 = vpop.f32.mrf.mxu0
  %v238 = vpop.f32.mrf.mxu0
  %v239 = vadd.f32 0.0, %v238
  %v240 = vpop.f32.mrf.mxu0
  %241 = vdwg.mxu0
  %v246 = vunpack.c.l.b16 %v169
  %v247 = vunpack.c.l.b16 %v170
  %v248 = vunpack.c.l.b16 %v171
  %v249 = vunpack.c.l.b16 %v172
  %v250 = vpack.c.b16 %v247, %v246
  %v251 = vpack.c.b16 %v249, %v248
  %254 = vmatprep.subr.bf16.mxu0 0
  %255 = vmatpush1.bf16.msra.mxu0 0
  %256 = vmatprep.subr.bf16.mxu0 0
  %257 = vmatpush1.bf16.msra.mxu0 0
  %258 = vmatprep.subr.bf16.mxu0 0
  %259 = vmatpush1.bf16.msra.mxu0 0
  %260 = vmatprep.subr.bf16.mxu0 0
  %261 = vmatpush1.bf16.msra.mxu0 0
  %262 = vmatprep.subr.bf16.mxu0 0
  %263 = vmatpush1.bf16.msra.mxu0 0
  %264 = vmatprep.subr.bf16.mxu0 0
  %265 = vmatpush1.bf16.msra.mxu0 0
  %266 = vmatprep.subr.bf16.mxu0 0
  %267 = vmatpush1.bf16.msra.mxu0 %v251
  %268 = vmatprep.subr.bf16.mxu0 0
  %269 = vmatpush1.bf16.msra.mxu0 %v250
  %270 = vmatprep.subr.bf16.mxu0 0
  %271 = vmatpush2.bf16.msra.mxu0 0
  %272 = vmatprep.subr.bf16.mxu0 0
  %273 = vmatpush2.bf16.msra.mxu0 0
  %274 = vmatprep.subr.bf16.mxu0 0
  %275 = vmatpush2.bf16.msra.mxu0 0
  %276 = vmatprep.subr.bf16.mxu0 0
  %277 = vmatpush2.bf16.msra.mxu0 0
  %278 = vmatprep.subr.bf16.mxu0 0
  %279 = vmatpush2.bf16.msra.mxu0 0
  %280 = vmatprep.subr.bf16.mxu0 0
  %281 = vmatpush2.bf16.msra.mxu0 0
  %282 = vmatprep.subr.bf16.mxu0 0
  %283 = vmatpush2.bf16.msra.mxu0 0
  %284 = vmatprep.subr.bf16.mxu0 0
  %285 = vmatpush2.bf16.msra.mxu0 0
  %286 = vmatprep.mubr.bf16.mxu0 0
  %287 = vmatmul.mubr.bf16.gmra.mxu0 %v57
  %v288 = vpop.f32.mrf.mxu0
  %v289 = vadd.f32 %v228, %v288
  %v290 = vpop.f32.mrf.mxu0
  %v291 = vpop.f32.mrf.mxu0
  %v292 = vadd.f32 %v231, %v291
  %v293 = vpop.f32.mrf.mxu0
  %294 = vmatprep.mubr.bf16.mxu0 0
  %295 = vmatmul.mubr.bf16.gmra.mxu0 %v60
  %v296 = vpop.f32.mrf.mxu0
  %v297 = vadd.f32 %v236, %v296
  %v298 = vpop.f32.mrf.mxu0
  %v299 = vpop.f32.mrf.mxu0
  %v300 = vadd.f32 %v239, %v299
  %v301 = vpop.f32.mrf.mxu0
  %302 = vdwg.mxu0
  %v319 = vunpack.c.l.b16 %v153
  %v320 = vunpack.c.l.b16 %v154
  %v321 = vunpack.c.l.b16 %v155
  %v322 = vunpack.c.l.b16 %v156
  %v323 = vunpack.c.l.b16 %v157
  %v324 = vunpack.c.l.b16 %v158
  %v325 = vunpack.c.l.b16 %v159
  %v326 = vunpack.c.l.b16 %v160
  %v327 = vunpack.c.l.b16 %v161
  %v328 = vunpack.c.l.b16 %v162
  %v329 = vunpack.c.l.b16 %v163
  %v330 = vunpack.c.l.b16 %v164
  %v331 = vunpack.c.l.b16 %v165
  %v332 = vunpack.c.l.b16 %v166
  %v333 = vunpack.c.l.b16 %v167
  %v334 = vunpack.c.l.b16 %v168
  %v335 = vpack.c.b16 %v320, %v319
  %v336 = vpack.c.b16 %v322, %v321
  %v337 = vpack.c.b16 %v324, %v323
  %v338 = vpack.c.b16 %v326, %v325
  %v339 = vpack.c.b16 %v328, %v327
  %v340 = vpack.c.b16 %v330, %v329
  %v341 = vpack.c.b16 %v332, %v331
  %v342 = vpack.c.b16 %v334, %v333
  %351 = vmatprep.subr.bf16.mxu0 0
  %352 = vmatpush1.bf16.msra.mxu0 %v342
  %353 = vmatprep.subr.bf16.mxu0 0
  %354 = vmatpush1.bf16.msra.mxu0 %v341
  %355 = vmatprep.subr.bf16.mxu0 0
  %356 = vmatpush1.bf16.msra.mxu0 %v340
  %357 = vmatprep.subr.bf16.mxu0 0
  %358 = vmatpush1.bf16.msra.mxu0 %v339
  %359 = vmatprep.subr.bf16.mxu0 0
  %360 = vmatpush1.bf16.msra.mxu0 %v338
  %361 = vmatprep.subr.bf16.mxu0 0
  %362 = vmatpush1.bf16.msra.mxu0 %v337
  %363 = vmatprep.subr.bf16.mxu0 0
  %364 = vmatpush1.bf16.msra.mxu0 %v336
  %365 = vmatprep.subr.bf16.mxu0 0
  %366 = vmatpush1.bf16.msra.mxu0 %v335
  %367 = vmatprep.subr.bf16.mxu0 0
  %368 = vmatpush2.bf16.msra.mxu0 0
  %369 = vmatprep.subr.bf16.mxu0 0
  %370 = vmatpush2.bf16.msra.mxu0 0
  %371 = vmatprep.subr.bf16.mxu0 0
  %372 = vmatpush2.bf16.msra.mxu0 0
  %373 = vmatprep.subr.bf16.mxu0 0
  %374 = vmatpush2.bf16.msra.mxu0 0
  %375 = vmatprep.subr.bf16.mxu0 0
  %376 = vmatpush2.bf16.msra.mxu0 0
  %377 = vmatprep.subr.bf16.mxu0 0
  %378 = vmatpush2.bf16.msra.mxu0 0
  %379 = vmatprep.subr.bf16.mxu0 0
  %380 = vmatpush2.bf16.msra.mxu0 0
  %381 = vmatprep.subr.bf16.mxu0 0
  %382 = vmatpush2.bf16.msra.mxu0 0
  %383 = vmatprep.mubr.bf16.mxu0 0
  %384 = vmatmul.mubr.bf16.gmra.mxu0 %v151
  %v385 = vpop.f32.mrf.mxu0
  %v386 = vadd.f32 %v289, %v385
  %v387 = vpop.f32.mrf.mxu0
  %v388 = vpop.f32.mrf.mxu0
  %v389 = vadd.f32 %v292, %v388
  %v390 = vpop.f32.mrf.mxu0
  %391 = vmatprep.mubr.bf16.mxu0 0
  %392 = vmatmul.mubr.bf16.gmra.mxu0 %v152
  %v393 = vpop.f32.mrf.mxu0
  %v394 = vadd.f32 %v297, %v393
  %v395 = vpop.f32.mrf.mxu0
  %v396 = vpop.f32.mrf.mxu0
  %v397 = vadd.f32 %v300, %v396
  %v398 = vpop.f32.mrf.mxu0
  %399 = vdwg.mxu0
  %v400 = vld [vmem:[%s6] sm:$0x1]
  %v402 = vlaneseq
  %v403 = vshrl.u32 %v402, 7
  %v404 = vsub.s32 0, %v403
  %v405 = vrot.slane %v400, %v404
  %v407 = vadd.f32 %v386, %v405
  %v408 = vadd.f32 %v389, %v405
  %v409 = vadd.f32 %v394, %v405
  %v410 = vadd.f32 %v397, %v405
  %vm411 = vcmask 31744
  %412 = vst.msk [vmem:[%s7] sm:$0xff] %vm411, %v407
  %413 = vst.msk [vmem:[%s7 + $0x8] sm:$0xff] %vm411, %v408
  %414 = vst.msk [vmem:[%s7 + $0x10] sm:$0xff] %vm411, %v409
  %415 = vst.msk [vmem:[%s7 + $0x18] sm:$0xff] %vm411, %v410
  // Predicated region
  $region30: #{_biaffine_impl.1} parent=0 // pred_check
    _
  $region31: #{_biaffine_impl.1} parent=0 // pred_check_branch
    %417 = sbr.rel (0) target = $region33
  $region32: #{_biaffine_impl.1} parent=0 // pred_region
    _
  $region33: #{_biaffine_impl.1} parent=0 // pred_fallthru
    _
  // Predicated region
  $region34: #{_biaffine_impl.1} parent=0 // pred_check
    _
  $region35: #{_biaffine_impl.1} parent=0 // pred_check_branch
    %419 = sbr.rel (0) target = $region37
  $region36: #{_biaffine_impl.1} parent=0 // pred_region
    _
  $region37: #{_biaffine_impl.1} parent=0 // pred_fallthru
    _

</llo_original>
